<compile_context>
chip_gen: v6e
topology: v6e:2x2x1
jax: 0.10.0
libtpu: 0.0.40
codegen_flags: <defaults>
</compile_context>

<pallas_src>
import functools

import jax
import jax.numpy as jnp
from jax.experimental import pallas as pl
from jax.experimental.pallas import tpu as pltpu

EPS = 1e-5
VMEM_LIMIT = 48 * 1024 * 1024  # explicit budget; safe on v7x (64 MiB physical VMEM)


# ----------------------------- Pallas kernels ------------------------------ #

def _pw_conv_kernel(x_ref, scale_ref, bias_ref, w_ref, o_ref):
    # x_ref: (tm, Cin) f32, scale/bias: (1, Cin) f32, w_ref: (Cin, Cout) bf16
    a = jnp.maximum(x_ref[...] * scale_ref[...] + bias_ref[...], 0.0)
    o_ref[...] = jnp.dot(a.astype(jnp.bfloat16), w_ref[...],
                         preferred_element_type=jnp.float32).astype(o_ref.dtype)


def _pw_conv_add_kernel(x_ref, scale_ref, bias_ref, w_ref, sc_ref, o_ref):
    # Same as above + residual add of sc_ref: (tm, Cout) f32
    a = jnp.maximum(x_ref[...] * scale_ref[...] + bias_ref[...], 0.0)
    y = jnp.dot(a.astype(jnp.bfloat16), w_ref[...],
                preferred_element_type=jnp.float32) + sc_ref[...]
    o_ref[...] = y.astype(o_ref.dtype)


def _pw_conv_stats_kernel(x_ref, scale_ref, bias_ref, w_ref,
                          o_ref, sum_ref, ssq_ref, *, M, tm):
    # Emits per-tile sum / sum-of-squares of the conv output so the next BN does not
    # have to re-read the activation from HBM.
    a = jnp.maximum(x_ref[...] * scale_ref[...] + bias_ref[...], 0.0)
    y = jnp.dot(a.astype(jnp.bfloat16), w_ref[...],
                preferred_element_type=jnp.float32)
    o_ref[...] = y.astype(o_ref.dtype)
    if M % tm != 0:
        # Ragged last block: exclude padded rows from the statistics.
        rows = pl.program_id(0) * tm + jax.lax.broadcasted_iota(jnp.int32, (tm, 1), 0)
        y = jnp.where(rows < M, y, 0.0)
    cout = y.shape[1]
    sum_ref[...] = jnp.sum(y, axis=0).reshape(1, 1, cout)
    ssq_ref[...] = jnp.sum(y * y, axis=0).reshape(1, 1, cout)


def _conv3x3_kernel(x_ref, scale_ref, bias_ref, w_ref,
                    o_ref, sum_ref, ssq_ref, pad_ref,
                    *, H, W, Cin, Cout, BR):
    # x_ref: (1, H, W, Cin) f32; w_ref: (3, 3, Cin, Cout) bf16; o_ref: (1, H, W, Cout) f32
    # sum/ssq: (1, 1, Cout) f32 per-image stats; pad_ref: (H+2, W+2, Cin) bf16 scratch.
    act = jnp.maximum(x_ref[0] * scale_ref[...] + bias_ref[...], 0.0)   # (H, W, Cin) f32

    # Zero only the border of the padded scratch; the interior is fully overwritten.
    zero_r = jnp.zeros((1, W + 2, Cin), pad_ref.dtype)
    pad_ref[0:1, :, :] = zero_r
    pad_ref[H + 1:H + 2, :, :] = zero_r
    zero_c = jnp.zeros((H + 2, 1, Cin), pad_ref.dtype)
    pad_ref[:, 0:1, :] = zero_c
    pad_ref[:, W + 1:W + 2, :] = zero_c
    pad_ref[1:H + 1, 1:W + 1, :] = act.astype(pad_ref.dtype)

    sum_ref[...] = jnp.zeros((1, 1, Cout), jnp.float32)
    ssq_ref[...] = jnp.zeros((1, 1, Cout), jnp.float32)

    n_bands = H // BR  # BR divides H (picked by the wrapper)

    @pl.loop(0, n_bands)
    def _(b):
        r0 = b * BR
        acc = jnp.zeros((BR * W, Cout), jnp.float32)
        for ky in range(3):
            for kx in range(3):
                lhs = pad_ref[pl.ds(r0 + ky, BR), pl.ds(kx, W), :]      # (BR, W, Cin) bf16
                acc = acc + jnp.dot(lhs.reshape(BR * W, Cin), w_ref[ky, kx],
                                    preferred_element_type=jnp.float32)
        o_ref[0, pl.ds(r0, BR)] = acc.reshape(BR, W, Cout).astype(o_ref.dtype)
        sum_ref[...] += jnp.sum(acc, axis=0).reshape(1, 1, Cout)
        ssq_ref[...] += jnp.sum(acc * acc, axis=0).reshape(1, 1, Cout)


# ----------------------------- kernel wrappers ------------------------------ #

def _pw_conv(x2d, scale, bias, w_bf16, shortcut=None, collect_stats=False):
    """relu(x2d * scale + bias) @ w (+ shortcut). Optionally emits per-tile BN stats."""
    M, Cin = x2d.shape
    Cout = w_bf16.shape[1]
    tm = 512 if M >= 512 else M            # fixed large row tile; ragged last block OK
    grid = (pl.cdiv(M, tm),)
    num_tiles = pl.cdiv(M, tm)
    scale2 = scale.reshape(1, Cin).astype(jnp.float32)
    bias2 = bias.reshape(1, Cin).astype(jnp.float32)

    x_spec = pl.BlockSpec((tm, Cin), lambda i: (i, 0))
    sb_spec = pl.BlockSpec((1, Cin), lambda i: (0, 0))
    w_spec = pl.BlockSpec((Cin, Cout), lambda i: (0, 0))
    o_spec = pl.BlockSpec((tm, Cout), lambda i: (i, 0))
    # TODO(synk): when Cout < 128 the output store is lane-masked; packing spatial into
    # lanes would make it dense, left out to keep the wrapper simple.
    cparams = pltpu.CompilerParams(dimension_semantics=("parallel",),
                                   vmem_limit_bytes=VMEM_LIMIT)
    out_dtype = x2d.dtype

    if collect_stats:
        kern = functools.partial(_pw_conv_stats_kernel, M=M, tm=tm)
        return pl.pallas_call(
            kern,
            out_shape=(jax.ShapeDtypeStruct((M, Cout), out_dtype),
                       jax.ShapeDtypeStruct((num_tiles, 1, Cout), jnp.float32),
                       jax.ShapeDtypeStruct((num_tiles, 1, Cout), jnp.float32)),
            grid=grid,
            in_specs=[x_spec, sb_spec, sb_spec, w_spec],
            out_specs=(o_spec,
                       pl.BlockSpec((1, 1, Cout), lambda i: (i, 0, 0)),
                       pl.BlockSpec((1, 1, Cout), lambda i: (i, 0, 0))),
            compiler_params=cparams,
        )(x2d, scale2, bias2, w_bf16)

    if shortcut is not None:
        return pl.pallas_call(
            _pw_conv_add_kernel,
            out_shape=jax.ShapeDtypeStruct((M, Cout), out_dtype),
            grid=grid,
            in_specs=[x_spec, sb_spec, sb_spec, w_spec,
                      pl.BlockSpec((tm, Cout), lambda i: (i, 0))],
            out_specs=o_spec,
            compiler_params=cparams,
        )(x2d, scale2, bias2, w_bf16, shortcut)

    return pl.pallas_call(
        _pw_conv_kernel,
        out_shape=jax.ShapeDtypeStruct((M, Cout), out_dtype),
        grid=grid,
        in_specs=[x_spec, sb_spec, sb_spec, w_spec],
        out_specs=o_spec,
        compiler_params=cparams,
    )(x2d, scale2, bias2, w_bf16)


def _pick_band_rows(H, W):
    """Smallest divisor of H whose band gives >=256 LHS rows per MXU call (if possible)."""
    target = min(H, max(1, -(-256 // W)))
    for d in range(target, H + 1):
        if H % d == 0:
            return d
    return H


def _conv3x3(x_nhwc, scale, bias, w_bf16):
    """Fused relu(x*scale+bias) -> 3x3 conv (stride 1, pad 1). Emits per-image BN stats."""
    N, H, W, Cin = x_nhwc.shape
    Cout = w_bf16.shape[-1]
    BR = _pick_band_rows(H, W)
    kern = functools.partial(_conv3x3_kernel, H=H, W=W, Cin=Cin, Cout=Cout, BR=BR)
    return pl.pallas_call(
        kern,
        out_shape=(jax.ShapeDtypeStruct((N, H, W, Cout), x_nhwc.dtype),
                   jax.ShapeDtypeStruct((N, 1, Cout), jnp.float32),
                   jax.ShapeDtypeStruct((N, 1, Cout), jnp.float32)),
        grid=(N,),
        in_specs=[
            pl.BlockSpec((1, H, W, Cin), lambda n: (n, 0, 0, 0)),
            pl.BlockSpec((1, Cin), lambda n: (0, 0)),
            pl.BlockSpec((1, Cin), lambda n: (0, 0)),
            pl.BlockSpec((3, 3, Cin, Cout), lambda n: (0, 0, 0, 0)),
        ],
        out_specs=(pl.BlockSpec((1, H, W, Cout), lambda n: (n, 0, 0, 0)),
                   pl.BlockSpec((1, 1, Cout), lambda n: (n, 0, 0)),
                   pl.BlockSpec((1, 1, Cout), lambda n: (n, 0, 0))),
        scratch_shapes=[pltpu.VMEM((H + 2, W + 2, Cin), jnp.bfloat16)],
        compiler_params=pltpu.CompilerParams(dimension_semantics=("parallel",),
                                             vmem_limit_bytes=VMEM_LIMIT),
    )(x_nhwc, scale.reshape(1, Cin).astype(jnp.float32),
      bias.reshape(1, Cin).astype(jnp.float32), w_bf16)


# ------------------------------ module forward ------------------------------ #

def _fold(s, ss, count, gamma, beta):
    """Fold batch-norm (train-mode) into per-channel scale/bias from sum and sum^2."""
    mean = s / count
    var = jnp.maximum(ss / count - mean * mean, 0.0)
    inv = gamma / jnp.sqrt(var + EPS)
    return inv, beta - mean * inv


def preact_bottleneck_forward(x_nchw, params, stride=1):
    """x_nchw: (N, in_planes, H, W) float32 -> (N, 4*planes, Ho, Wo)."""
    x = jnp.transpose(x_nchw, (0, 2, 3, 1)).astype(jnp.float32)  # NHWC
    N, H, W, Cin = x.shape
    planes = params["w1"].shape[1]
    exp_c = 4 * planes

    w1 = params["w1"].astype(jnp.bfloat16)
    w2 = params["w2"].astype(jnp.bfloat16)
    w3 = params["w3"].astype(jnp.bfloat16)

    # bn1 folding. TODO(synk): bn1 statistics are over the block *input* (no producing
    # kernel to fuse into), so this single-pass sum/sum^2 stays in plain JAX glue.
    cnt = float(N * H * W)
    s0 = jnp.sum(x, axis=(0, 1, 2))
    ss0 = jnp.sum(jnp.square(x), axis=(0, 1, 2))
    s1, b1 = _fold(s0, ss0, cnt, params["bn1_gamma"], params["bn1_beta"])

    # bn1 + relu + conv1 (1x1), emitting bn2 statistics as a side output.
    out1_2d, sum1, ssq1 = _pw_conv(x.reshape(N * H * W, Cin), s1, b1, w1,
                                   collect_stats=True)
    out1 = out1_2d.reshape(N, H, W, planes)
    s2, b2 = _fold(jnp.sum(sum1, axis=(0, 1)), jnp.sum(ssq1, axis=(0, 1)), cnt,
                   params["bn2_gamma"], params["bn2_beta"])

    # shortcut branch (1x1 conv of the bn1+relu activation, possibly strided)
    if stride != 1 or Cin != exp_c:
        xs = x[:, ::stride, ::stride, :]  # subsampling commutes with pointwise bn+relu
        Ns, Hs, Ws, _ = xs.shape
        w_sc = params["w_sc"].astype(jnp.bfloat16)
        shortcut = _pw_conv(xs.reshape(Ns * Hs * Ws, Cin), s1, b1, w_sc)
        shortcut = shortcut.reshape(N, Hs, Ws, exp_c)
    else:
        shortcut = x

    # bn2 + relu + conv2 (3x3, pad 1), emitting bn3 statistics.
    out2_full, sum2, ssq2 = _conv3x3(out1, s2, b2, w2)
    # TODO(synk): for stride>1 the strided output is produced by subsampling the stride-1
    # result in glue; computing only the strided rows/cols in-kernel would save ~stride^2
    # MXU work and output HBM traffic on downsampling blocks.
    out2 = out2_full[:, ::stride, ::stride, :]

    if stride == 1:
        s3, b3 = _fold(jnp.sum(sum2, axis=(0, 1)), jnp.sum(ssq2, axis=(0, 1)), cnt,
                       params["bn3_gamma"], params["bn3_beta"])
    else:
        cnt3 = float(out2.shape[0] * out2.shape[1] * out2.shape[2])
        s_ = jnp.sum(out2, axis=(0, 1, 2))
        ss_ = jnp.sum(jnp.square(out2), axis=(0, 1, 2))
        s3, b3 = _fold(s_, ss_, cnt3, params["bn3_gamma"], params["bn3_beta"])

    # bn3 + relu + conv3 (1x1) + residual add
    No, Ho, Wo, _ = out2.shape
    out = _pw_conv(out2.reshape(No * Ho * Wo, planes), s3, b3, w3,
                   shortcut=shortcut.reshape(No * Ho * Wo, exp_c))
    out = out.reshape(No, Ho, Wo, exp_c)
    return jnp.transpose(out, (0, 3, 1, 2))  # back to NCHW


# ------------------------- params + pure-JAX reference ---------------------- #

def init_params(key, in_planes, planes, stride):
    ks = jax.random.split(key, 4)
    p = {
        "bn1_gamma": jnp.ones((in_planes,), jnp.float32),
        "bn1_beta": jnp.zeros((in_planes,), jnp.float32),
        "bn2_gamma": jnp.ones((planes,), jnp.float32),
        "bn2_beta": jnp.zeros((planes,), jnp.float32),
        "bn3_gamma": jnp.ones((planes,), jnp.float32),
        "bn3_beta": jnp.zeros((planes,), jnp.float32),
        "w1": jax.random.normal(ks[0], (in_planes, planes), jnp.float32) * 0.1,
        "w2": jax.random.normal(ks[1], (3, 3, planes, planes), jnp.float32) * 0.1,
        "w3": jax.random.normal(ks[2], (planes, 4 * planes), jnp.float32) * 0.1,
    }
    if stride != 1 or in_planes != 4 * planes:
        p["w_sc"] = jax.random.normal(ks[3], (in_planes, 4 * planes), jnp.float32) * 0.1
    return p


def reference_forward(x_nchw, params, stride=1):
    def bn_relu(x, gamma, beta):
        mean = jnp.mean(x, axis=(0, 2, 3), keepdims=True)
        var = jnp.mean(jnp.square(x - mean), axis=(0, 2, 3), keepdims=True)
        y = (x - mean) / jnp.sqrt(var + EPS)
        y = y * gamma.reshape(1, -1, 1, 1) + beta.reshape(1, -1, 1, 1)
        return jnp.maximum(y, 0.0)

    def conv(x, w_oihw, s, pad):
        return jax.lax.conv_general_dilated(
            x, w_oihw, (s, s), [(pad, pad), (pad, pad)],
            dimension_numbers=("NCHW", "OIHW", "NCHW"),
            precision=jax.lax.Precision.HIGHEST)

    w1 = jnp.transpose(params["w1"], (1, 0))[:, :, None, None]
    w2 = jnp.transpose(params["w2"], (3, 2, 0, 1))
    w3 = jnp.transpose(params["w3"], (1, 0))[:, :, None, None]

    a1 = bn_relu(x_nchw, params["bn1_gamma"], params["bn1_beta"])
    if "w_sc" in params:
        wsc = jnp.transpose(params["w_sc"], (1, 0))[:, :, None, None]
        shortcut = conv(a1, wsc, stride, 0)
    else:
        shortcut = x_nchw
    out = conv(a1, w1, 1, 0)
    out = conv(bn_relu(out, params["bn2_gamma"], params["bn2_beta"]), w2, stride, 1)
    out = conv(bn_relu(out, params["bn3_gamma"], params["bn3_beta"]), w3, 1, 0)
    return out + shortcut


# ----------------------------------- main ----------------------------------- #

if __name__ == "__main__":
    key = jax.random.PRNGKey(0)
    k_x, k_p = jax.random.split(key)

    in_planes, planes, stride = 4, 4, 1
    x = jax.random.normal(k_x, (2, in_planes, 16, 16), jnp.float32)
    params = init_params(k_p, in_planes, planes, stride)

    out = preact_bottleneck_forward(x, params, stride=stride)
    out = jax.block_until_ready(out)

    ref = reference_forward(x, params, stride=stride)
    assert out.shape == ref.shape, (out.shape, ref.shape)
    max_err = float(jnp.max(jnp.abs(out - ref)))
    # Tolerance accounts for bf16 MXU operands (f32 accumulation) vs. the f32-HIGHEST
    # reference; genuine bugs produce errors >= 1e-1 at these scales.
    assert max_err < 3e-2, f"max abs error too large: {max_err}"

    print("KERNEL_OK")
</pallas_src>

<mosaic_0001>
module attributes {stable_mosaic.version = 11 : i64} {
  func.func @_pw_conv_stats_kernel(%arg0: i32, %arg1: memref<512x4xf32, #tpu.memory_space<vmem>>, %arg2: memref<1x4xf32, #tpu.memory_space<vmem>>, %arg3: memref<1x4xf32, #tpu.memory_space<vmem>>, %arg4: memref<4x4xbf16, #tpu.memory_space<vmem>>, %arg5: memref<512x4xf32, #tpu.memory_space<vmem>>, %arg6: memref<1x1x4xf32, #tpu.memory_space<vmem>>, %arg7: memref<1x1x4xf32, #tpu.memory_space<vmem>>) attributes {dimension_semantics = [#tpu.dimension_semantics<parallel>], iteration_bounds = array<i64: 1>, scalar_prefetch = 0 : i64, scratch_operands = 0 : i64, tpu.core_type = #tpu.core_type<tc>, window_params = [{transform_indices = @transform_0, window_bounds = array<i64: 512, 4>}, {pipeline_mode = #tpu.pipeline_mode<synchronous>, transform_indices = @transform_1, window_bounds = array<i64: 1, 4>}, {pipeline_mode = #tpu.pipeline_mode<synchronous>, transform_indices = @transform_2, window_bounds = array<i64: 1, 4>}, {pipeline_mode = #tpu.pipeline_mode<synchronous>, transform_indices = @transform_3, window_bounds = array<i64: 4, 4>}, {transform_indices = @transform_4, window_bounds = array<i64: 512, 4>}, {transform_indices = @transform_5, window_bounds = array<i64: 1, 1, 4>}, {transform_indices = @transform_6, window_bounds = array<i64: 1, 1, 4>}]} {
    %c0 = arith.constant 0 : index
    %c0_0 = arith.constant 0 : index
    %0 = vector.load %arg1[%c0, %c0_0] : memref<512x4xf32, #tpu.memory_space<vmem>>, vector<512x4xf32>
    %c0_1 = arith.constant 0 : index
    %c0_2 = arith.constant 0 : index
    %1 = vector.load %arg2[%c0_1, %c0_2] : memref<1x4xf32, #tpu.memory_space<vmem>>, vector<1x4xf32>
    %2 = vector.broadcast %1 : vector<1x4xf32> to vector<512x4xf32>
    %3 = arith.mulf %0, %2 : vector<512x4xf32>
    %c0_3 = arith.constant 0 : index
    %c0_4 = arith.constant 0 : index
    %4 = vector.load %arg3[%c0_3, %c0_4] : memref<1x4xf32, #tpu.memory_space<vmem>>, vector<1x4xf32>
    %5 = vector.broadcast %4 : vector<1x4xf32> to vector<512x4xf32>
    %6 = arith.addf %3, %5 : vector<512x4xf32>
    %cst = arith.constant 0.000000e+00 : f32
    %7 = vector.broadcast %cst : f32 to vector<512x4xf32>
    %8 = arith.maximumf %6, %7 : vector<512x4xf32>
    %9 = arith.truncf %8 : vector<512x4xf32> to vector<512x4xbf16>
    %c0_5 = arith.constant 0 : index
    %c0_6 = arith.constant 0 : index
    %10 = vector.load %arg4[%c0_5, %c0_6] : memref<4x4xbf16, #tpu.memory_space<vmem>>, vector<4x4xbf16>
    %cst_7 = arith.constant dense<0.000000e+00> : vector<512x4xf32>
    %11 = tpu.matmul %9, %10, %cst_7 {dimension_numbers = #tpu.dot_dimension_numbers<[1], [0], [0], [1], [0, 0, 1, 1], [], []>} : vector<512x4xbf16>, vector<4x4xbf16>, vector<512x4xf32> -> vector<512x4xf32>
    %c0_8 = arith.constant 0 : index
    %c0_9 = arith.constant 0 : index
    %12 = vector.load %arg5[%c0_8, %c0_9] : memref<512x4xf32, #tpu.memory_space<vmem>>, vector<512x4xf32>
    tpu.vector_store %arg5[%c0_8, %c0_9], %11 {strides = array<i32>} : memref<512x4xf32, #tpu.memory_space<vmem>>, vector<512x4xf32>,
    %cst_10 = arith.constant dense<0.000000e+00> : vector<4xf32>
    %13 = vector.multi_reduction <add>, %11, %cst_10 [0] : vector<512x4xf32> to vector<4xf32>
    %14 = vector.shape_cast %13 : vector<4xf32> to vector<1x1x4xf32>
    %c0_11 = arith.constant 0 : index
    %c0_12 = arith.constant 0 : index
    %c0_13 = arith.constant 0 : index
    %15 = vector.load %arg6[%c0_11, %c0_12, %c0_13] : memref<1x1x4xf32, #tpu.memory_space<vmem>>, vector<1x1x4xf32>
    tpu.vector_store %arg6[%c0_11, %c0_12, %c0_13], %14 {strides = array<i32>} : memref<1x1x4xf32, #tpu.memory_space<vmem>>, vector<1x1x4xf32>,
    %16 = arith.mulf %11, %11 : vector<512x4xf32>
    %cst_14 = arith.constant dense<0.000000e+00> : vector<4xf32>
    %17 = vector.multi_reduction <add>, %16, %cst_14 [0] : vector<512x4xf32> to vector<4xf32>
    %18 = vector.shape_cast %17 : vector<4xf32> to vector<1x1x4xf32>
    %c0_15 = arith.constant 0 : index
    %c0_16 = arith.constant 0 : index
    %c0_17 = arith.constant 0 : index
    %19 = vector.load %arg7[%c0_15, %c0_16, %c0_17] : memref<1x1x4xf32, #tpu.memory_space<vmem>>, vector<1x1x4xf32>
    tpu.vector_store %arg7[%c0_15, %c0_16, %c0_17], %18 {strides = array<i32>} : memref<1x1x4xf32, #tpu.memory_space<vmem>>, vector<1x1x4xf32>,
    return
  }
  func.func @transform_0(%arg0: i32) -> (i32, i32) {
    %c0_i32 = arith.constant 0 : i32
    %c0_i32_0 = arith.constant 0 : i32
    return %arg0, %c0_i32 : i32, i32
  }
  func.func @transform_1(%arg0: i32) -> (i32, i32) {
    %c0_i32 = arith.constant 0 : i32
    %c0_i32_0 = arith.constant 0 : i32
    %c0_i32_1 = arith.constant 0 : i32
    return %c0_i32, %c0_i32_0 : i32, i32
  }
  func.func @transform_2(%arg0: i32) -> (i32, i32) {
    %c0_i32 = arith.constant 0 : i32
    %c0_i32_0 = arith.constant 0 : i32
    %c0_i32_1 = arith.constant 0 : i32
    return %c0_i32, %c0_i32_0 : i32, i32
  }
  func.func @transform_3(%arg0: i32) -> (i32, i32) {
    %c0_i32 = arith.constant 0 : i32
    %c0_i32_0 = arith.constant 0 : i32
    %c0_i32_1 = arith.constant 0 : i32
    return %c0_i32, %c0_i32_0 : i32, i32
  }
  func.func @transform_4(%arg0: i32) -> (i32, i32) {
    %c0_i32 = arith.constant 0 : i32
    %c0_i32_0 = arith.constant 0 : i32
    return %arg0, %c0_i32 : i32, i32
  }
  func.func @transform_5(%arg0: i32) -> (i32, i32, i32) {
    %c0_i32 = arith.constant 0 : i32
    %c0_i32_0 = arith.constant 0 : i32
    %c0_i32_1 = arith.constant 0 : i32
    return %arg0, %c0_i32, %c0_i32_0 : i32, i32, i32
  }
  func.func @transform_6(%arg0: i32) -> (i32, i32, i32) {
    %c0_i32 = arith.constant 0 : i32
    %c0_i32_0 = arith.constant 0 : i32
    %c0_i32_1 = arith.constant 0 : i32
    return %arg0, %c0_i32, %c0_i32_0 : i32, i32, i32
  }
}

</mosaic_0001>

<llo_original>
// kernel: tpu_custom_call.1
$region0: #{tpu_custom_call.1}
  #allocation0 [shape = 'u32[]', space=smem, size = 0x4, offset = 0x4, fixed_abs, tag = 'smem constant byte address 0x4 - core index']
  #allocation1 [shape = 'u32[144,128]{1,0:T(1,128)}', space=vmem, size = 0x12000, scoped, tag = 'internal scratch']
  %s0 = inlined_call_operand.vmem [shape: f32[512,4], index: 0, kind: input, shape index: {}]
  %s1 = inlined_call_operand.vmem [shape: f32[1,4], index: 1, kind: input, shape index: {}]
  %s2 = inlined_call_operand.vmem [shape: f32[1,4], index: 2, kind: input, shape index: {}]
  %s3 = inlined_call_operand.vmem [shape: bf16[4,4], index: 3, kind: input, shape index: {}]
  %s4 = inlined_call_operand.vmem [shape: f32[512,4], index: 4, kind: output, shape index: {0}]
  %s5 = inlined_call_operand.hbm [shape: f32[1,1,4], index: 5, kind: output, shape index: {1}]
  %s6 = inlined_call_operand.hbm [shape: f32[1,1,4], index: 6, kind: output, shape index: {2}]
  %7 = xla_tuple %s4, %s5, %s6
  %s8 = sld [smem:[#allocation0]]
  $region42: #{tpu_custom_call.1} parent=0
    _
  %s10 = ssub.s32 1, %s8
  %s11 = scalar_select 0, %s10, %s8
  $region1: #{tpu_custom_call.1} parent=0
    #allocation2 [shape = 'u8[512]{0}', space=vmem, size = 0x400, scoped, tag = 'output window, operand 1, single buffered']
    #allocation3 [shape = 's32[1]{0}', space=sflag, size = 0x4, scoped, tag = 'scoped memory for tpu_custom_call.1']
    #allocation4 [shape = 'u8[512]{0}', space=vmem, size = 0x400, scoped, tag = 'output window, operand 2, single buffered']
    #allocation5 [shape = 's32[1]{0}', space=sflag, size = 0x4, scoped, tag = 'scoped memory for tpu_custom_call.1']
    %12 = vsyncpa [#allocation3], 0
    %13 = vsyncpa [#allocation5], 0
    // Predicated region
    $region2: #{tpu_custom_call.1} parent=1 // pred_check
      _
    $region3: #{tpu_custom_call.1} parent=1 // pred_check_branch
      %15 = sbr.rel (0) target = $region5
    $region4: #{tpu_custom_call.1} parent=1 // pred_region
      _
    $region5: #{tpu_custom_call.1} parent=1 // pred_fallthru
      _
    // Predicated region
    $region6: #{tpu_custom_call.1} parent=1 // pred_check
      _
    $region7: #{tpu_custom_call.1} parent=1 // pred_check_branch
      %17 = sbr.rel (0) target = $region9
    $region8: #{tpu_custom_call.1} parent=1 // pred_region
      _
    $region9: #{tpu_custom_call.1} parent=1 // pred_fallthru
      _
    // Predicated region
    $region10: #{tpu_custom_call.1} parent=1 // pred_check
      _
    $region11: #{tpu_custom_call.1} parent=1 // pred_check_branch
      %19 = sbr.rel (0) target = $region13
    $region12: #{tpu_custom_call.1} parent=1 // pred_region
      _
    $region13: #{tpu_custom_call.1} parent=1 // pred_fallthru
      _
    // Predicated region
    $region14: #{tpu_custom_call.1} parent=1 // pred_check
      _
    $region15: #{tpu_custom_call.1} parent=1 // pred_check_branch
      %21 = sbr.rel (0) target = $region17
    $region16: #{tpu_custom_call.1} parent=1 // pred_region
      _
    $region17: #{tpu_custom_call.1} parent=1 // pred_fallthru
      _
    %v23 = vld [vmem:[%s0] sm:$0xff]
    %v24 = vld [vmem:[%s0 + $0x8] sm:$0xff]
    %v25 = vld [vmem:[%s0 + $0x10] sm:$0xff]
    %v26 = vld [vmem:[%s0 + $0x18] sm:$0xff]
    %v27 = vld [vmem:[%s0 + $0x20] sm:$0xff]
    %v28 = vld [vmem:[%s0 + $0x28] sm:$0xff]
    %v29 = vld [vmem:[%s0 + $0x30] sm:$0xff]
    %v30 = vld [vmem:[%s0 + $0x38] sm:$0xff]
    %v31 = vld [vmem:[%s0 + $0x40] sm:$0xff]
    %v32 = vld [vmem:[%s0 + $0x48] sm:$0xff]
    %v33 = vld [vmem:[%s0 + $0x50] sm:$0xff]
    %v34 = vld [vmem:[%s0 + $0x58] sm:$0xff]
    %v35 = vld [vmem:[%s0 + $0x60] sm:$0xff]
    %v36 = vld [vmem:[%s0 + $0x68] sm:$0xff]
    %v37 = vld [vmem:[%s0 + $0x70] sm:$0xff]
    %v38 = vld [vmem:[%s0 + $0x78] sm:$0xff]
    %v39 = vld [vmem:[%s0 + $0x80] sm:$0xff]
    %v40 = vld [vmem:[%s0 + $0x88] sm:$0xff]
    %v41 = vld [vmem:[%s0 + $0x90] sm:$0xff]
    %v42 = vld [vmem:[%s0 + $0x98] sm:$0xff]
    %v43 = vld [vmem:[%s0 + $0xa0] sm:$0xff]
    %v44 = vld [vmem:[%s0 + $0xa8] sm:$0xff]
    %v45 = vld [vmem:[%s0 + $0xb0] sm:$0xff]
    %v46 = vld [vmem:[%s0 + $0xb8] sm:$0xff]
    %v47 = vld [vmem:[%s0 + $0xc0] sm:$0xff]
    %v48 = vld [vmem:[%s0 + $0xc8] sm:$0xff]
    %v49 = vld [vmem:[%s0 + $0xd0] sm:$0xff]
    %v50 = vld [vmem:[%s0 + $0xd8] sm:$0xff]
    %v51 = vld [vmem:[%s0 + $0xe0] sm:$0xff]
    %v52 = vld [vmem:[%s0 + $0xe8] sm:$0xff]
    %v53 = vld [vmem:[%s0 + $0xf0] sm:$0xff]
    %v54 = vld [vmem:[%s0 + $0xf8] sm:$0xff]
    %v55 = vld [vmem:[%s0 + $0x100] sm:$0xff]
    %v56 = vld [vmem:[%s0 + $0x108] sm:$0xff]
    %v57 = vld [vmem:[%s0 + $0x110] sm:$0xff]
    %v58 = vld [vmem:[%s0 + $0x118] sm:$0xff]
    %v59 = vld [vmem:[%s0 + $0x120] sm:$0xff]
    %v60 = vld [vmem:[%s0 + $0x128] sm:$0xff]
    %v61 = vld [vmem:[%s0 + $0x130] sm:$0xff]
    %v62 = vld [vmem:[%s0 + $0x138] sm:$0xff]
    %v63 = vld [vmem:[%s0 + $0x140] sm:$0xff]
    %v64 = vld [vmem:[%s0 + $0x148] sm:$0xff]
    %v65 = vld [vmem:[%s0 + $0x150] sm:$0xff]
    %v66 = vld [vmem:[%s0 + $0x158] sm:$0xff]
    %v67 = vld [vmem:[%s0 + $0x160] sm:$0xff]
    %v68 = vld [vmem:[%s0 + $0x168] sm:$0xff]
    %v69 = vld [vmem:[%s0 + $0x170] sm:$0xff]
    %v70 = vld [vmem:[%s0 + $0x178] sm:$0xff]
    %v71 = vld [vmem:[%s0 + $0x180] sm:$0xff]
    %v72 = vld [vmem:[%s0 + $0x188] sm:$0xff]
    %v73 = vld [vmem:[%s0 + $0x190] sm:$0xff]
    %v74 = vld [vmem:[%s0 + $0x198] sm:$0xff]
    %v75 = vld [vmem:[%s0 + $0x1a0] sm:$0xff]
    %v76 = vld [vmem:[%s0 + $0x1a8] sm:$0xff]
    %v77 = vld [vmem:[%s0 + $0x1b0] sm:$0xff]
    %v78 = vld [vmem:[%s0 + $0x1b8] sm:$0xff]
    %v79 = vld [vmem:[%s0 + $0x1c0] sm:$0xff]
    %v80 = vld [vmem:[%s0 + $0x1c8] sm:$0xff]
    %v81 = vld [vmem:[%s0 + $0x1d0] sm:$0xff]
    %v82 = vld [vmem:[%s0 + $0x1d8] sm:$0xff]
    %v83 = vld [vmem:[%s0 + $0x1e0] sm:$0xff]
    %v84 = vld [vmem:[%s0 + $0x1e8] sm:$0xff]
    %v85 = vld [vmem:[%s0 + $0x1f0] sm:$0xff]
    %v86 = vld [vmem:[%s0 + $0x1f8] sm:$0xff]
    %v87 = vld [vmem:[%s1] sm:$0x1]
    %v89 = vlaneseq
    %v90 = vshrl.u32 %v89, 7
    %v91 = vsub.s32 0, %v90
    %v92 = vrot.slane %v87, %v91
    %v94 = vmul.f32 %v23, %v92
    %v95 = vmul.f32 %v24, %v92
    %v96 = vmul.f32 %v25, %v92
    %v97 = vmul.f32 %v26, %v92
    %v98 = vmul.f32 %v27, %v92
    %v99 = vmul.f32 %v28, %v92
    %v100 = vmul.f32 %v29, %v92
    %v101 = vmul.f32 %v30, %v92
    %v102 = vmul.f32 %v31, %v92
    %v103 = vmul.f32 %v32, %v92
    %v104 = vmul.f32 %v33, %v92
    %v105 = vmul.f32 %v34, %v92
    %v106 = vmul.f32 %v35, %v92
    %v107 = vmul.f32 %v36, %v92
    %v108 = vmul.f32 %v37, %v92
    %v109 = vmul.f32 %v38, %v92
    %v110 = vmul.f32 %v39, %v92
    %v111 = vmul.f32 %v40, %v92
    %v112 = vmul.f32 %v41, %v92
    %v113 = vmul.f32 %v42, %v92
    %v114 = vmul.f32 %v43, %v92
    %v115 = vmul.f32 %v44, %v92
    %v116 = vmul.f32 %v45, %v92
    %v117 = vmul.f32 %v46, %v92
    %v118 = vmul.f32 %v47, %v92
    %v119 = vmul.f32 %v48, %v92
    %v120 = vmul.f32 %v49, %v92
    %v121 = vmul.f32 %v50, %v92
    %v122 = vmul.f32 %v51, %v92
    %v123 = vmul.f32 %v52, %v92
    %v124 = vmul.f32 %v53, %v92
    %v125 = vmul.f32 %v54, %v92
    %v126 = vmul.f32 %v55, %v92
    %v127 = vmul.f32 %v56, %v92
    %v128 = vmul.f32 %v57, %v92
    %v129 = vmul.f32 %v58, %v92
    %v130 = vmul.f32 %v59, %v92
    %v131 = vmul.f32 %v60, %v92
    %v132 = vmul.f32 %v61, %v92
    %v133 = vmul.f32 %v62, %v92
    %v134 = vmul.f32 %v63, %v92
    %v135 = vmul.f32 %v64, %v92
    %v136 = vmul.f32 %v65, %v92
    %v137 = vmul.f32 %v66, %v92
    %v138 = vmul.f32 %v67, %v92
    %v139 = vmul.f32 %v68, %v92
    %v140 = vmul.f32 %v69, %v92
    %v141 = vmul.f32 %v70, %v92
    %v142 = vmul.f32 %v71, %v92
    %v143 = vmul.f32 %v72, %v92
    %v144 = vmul.f32 %v73, %v92
    %v145 = vmul.f32 %v74, %v92
    %v146 = vmul.f32 %v75, %v92
    %v147 = vmul.f32 %v76, %v92
    %v148 = vmul.f32 %v77, %v92
    %v149 = vmul.f32 %v78, %v92
    %v150 = vmul.f32 %v79, %v92
    %v151 = vmul.f32 %v80, %v92
    %v152 = vmul.f32 %v81, %v92
    %v153 = vmul.f32 %v82, %v92
    %v154 = vmul.f32 %v83, %v92
    %v155 = vmul.f32 %v84, %v92
    %v156 = vmul.f32 %v85, %v92
    %v157 = vmul.f32 %v86, %v92
    %v158 = vld [vmem:[%s2] sm:$0x1]
    %v160 = vlaneseq
    %v161 = vshrl.u32 %v160, 7
    %v162 = vsub.s32 0, %v161
    %v163 = vrot.slane %v158, %v162
    %v165 = vadd.f32 %v94, %v163
    %v166 = vadd.f32 %v95, %v163
    %v167 = vadd.f32 %v96, %v163
    %v168 = vadd.f32 %v97, %v163
    %v169 = vadd.f32 %v98, %v163
    %v170 = vadd.f32 %v99, %v163
    %v171 = vadd.f32 %v100, %v163
    %v172 = vadd.f32 %v101, %v163
    %v173 = vadd.f32 %v102, %v163
    %v174 = vadd.f32 %v103, %v163
    %v175 = vadd.f32 %v104, %v163
    %v176 = vadd.f32 %v105, %v163
    %v177 = vadd.f32 %v106, %v163
    %v178 = vadd.f32 %v107, %v163
    %v179 = vadd.f32 %v108, %v163
    %v180 = vadd.f32 %v109, %v163
    %v181 = vadd.f32 %v110, %v163
    %v182 = vadd.f32 %v111, %v163
    %v183 = vadd.f32 %v112, %v163
    %v184 = vadd.f32 %v113, %v163
    %v185 = vadd.f32 %v114, %v163
    %v186 = vadd.f32 %v115, %v163
    %v187 = vadd.f32 %v116, %v163
    %v188 = vadd.f32 %v117, %v163
    %v189 = vadd.f32 %v118, %v163
    %v190 = vadd.f32 %v119, %v163
    %v191 = vadd.f32 %v120, %v163
    %v192 = vadd.f32 %v121, %v163
    %v193 = vadd.f32 %v122, %v163
    %v194 = vadd.f32 %v123, %v163
    %v195 = vadd.f32 %v124, %v163
    %v196 = vadd.f32 %v125, %v163
    %v197 = vadd.f32 %v126, %v163
    %v198 = vadd.f32 %v127, %v163
    %v199 = vadd.f32 %v128, %v163
    %v200 = vadd.f32 %v129, %v163
    %v201 = vadd.f32 %v130, %v163
    %v202 = vadd.f32 %v131, %v163
    %v203 = vadd.f32 %v132, %v163
    %v204 = vadd.f32 %v133, %v163
    %v205 = vadd.f32 %v134, %v163
    %v206 = vadd.f32 %v135, %v163
    %v207 = vadd.f32 %v136, %v163
    %v208 = vadd.f32 %v137, %v163
    %v209 = vadd.f32 %v138, %v163
    %v210 = vadd.f32 %v139, %v163
    %v211 = vadd.f32 %v140, %v163
    %v212 = vadd.f32 %v141, %v163
    %v213 = vadd.f32 %v142, %v163
    %v214 = vadd.f32 %v143, %v163
    %v215 = vadd.f32 %v144, %v163
    %v216 = vadd.f32 %v145, %v163
    %v217 = vadd.f32 %v146, %v163
    %v218 = vadd.f32 %v147, %v163
    %v219 = vadd.f32 %v148, %v163
    %v220 = vadd.f32 %v149, %v163
    %v221 = vadd.f32 %v150, %v163
    %v222 = vadd.f32 %v151, %v163
    %v223 = vadd.f32 %v152, %v163
    %v224 = vadd.f32 %v153, %v163
    %v225 = vadd.f32 %v154, %v163
    %v226 = vadd.f32 %v155, %v163
    %v227 = vadd.f32 %v156, %v163
    %v228 = vadd.f32 %v157, %v163
    %v229 = vmax.f32 %v165, 0.0
    %v230 = vmax.f32 %v166, 0.0
    %v231 = vmax.f32 %v167, 0.0
    %v232 = vmax.f32 %v168, 0.0
    %v233 = vmax.f32 %v169, 0.0
    %v234 = vmax.f32 %v170, 0.0
    %v235 = vmax.f32 %v171, 0.0
    %v236 = vmax.f32 %v172, 0.0
    %v237 = vmax.f32 %v173, 0.0
    %v238 = vmax.f32 %v174, 0.0
    %v239 = vmax.f32 %v175, 0.0
    %v240 = vmax.f32 %v176, 0.0
    %v241 = vmax.f32 %v177, 0.0
    %v242 = vmax.f32 %v178, 0.0
    %v243 = vmax.f32 %v179, 0.0
    %v244 = vmax.f32 %v180, 0.0
    %v245 = vmax.f32 %v181, 0.0
    %v246 = vmax.f32 %v182, 0.0
    %v247 = vmax.f32 %v183, 0.0
    %v248 = vmax.f32 %v184, 0.0
    %v249 = vmax.f32 %v185, 0.0
    %v250 = vmax.f32 %v186, 0.0
    %v251 = vmax.f32 %v187, 0.0
    %v252 = vmax.f32 %v188, 0.0
    %v253 = vmax.f32 %v189, 0.0
    %v254 = vmax.f32 %v190, 0.0
    %v255 = vmax.f32 %v191, 0.0
    %v256 = vmax.f32 %v192, 0.0
    %v257 = vmax.f32 %v193, 0.0
    %v258 = vmax.f32 %v194, 0.0
    %v259 = vmax.f32 %v195, 0.0
    %v260 = vmax.f32 %v196, 0.0
    %v261 = vmax.f32 %v197, 0.0
    %v262 = vmax.f32 %v198, 0.0
    %v263 = vmax.f32 %v199, 0.0
    %v264 = vmax.f32 %v200, 0.0
    %v265 = vmax.f32 %v201, 0.0
    %v266 = vmax.f32 %v202, 0.0
    %v267 = vmax.f32 %v203, 0.0
    %v268 = vmax.f32 %v204, 0.0
    %v269 = vmax.f32 %v205, 0.0
    %v270 = vmax.f32 %v206, 0.0
    %v271 = vmax.f32 %v207, 0.0
    %v272 = vmax.f32 %v208, 0.0
    %v273 = vmax.f32 %v209, 0.0
    %v274 = vmax.f32 %v210, 0.0
    %v275 = vmax.f32 %v211, 0.0
    %v276 = vmax.f32 %v212, 0.0
    %v277 = vmax.f32 %v213, 0.0
    %v278 = vmax.f32 %v214, 0.0
    %v279 = vmax.f32 %v215, 0.0
    %v280 = vmax.f32 %v216, 0.0
    %v281 = vmax.f32 %v217, 0.0
    %v282 = vmax.f32 %v218, 0.0
    %v283 = vmax.f32 %v219, 0.0
    %v284 = vmax.f32 %v220, 0.0
    %v285 = vmax.f32 %v221, 0.0
    %v286 = vmax.f32 %v222, 0.0
    %v287 = vmax.f32 %v223, 0.0
    %v288 = vmax.f32 %v224, 0.0
    %v289 = vmax.f32 %v225, 0.0
    %v290 = vmax.f32 %v226, 0.0
    %v291 = vmax.f32 %v227, 0.0
    %v292 = vmax.f32 %v228, 0.0
    %v293 = vpack.c.bf16 %v230, %v229
    %v294 = vpack.c.bf16 %v232, %v231
    %v295 = vpack.c.bf16 %v234, %v233
    %v296 = vpack.c.bf16 %v236, %v235
    %v297 = vpack.c.bf16 %v238, %v237
    %v298 = vpack.c.bf16 %v240, %v239
    %v299 = vpack.c.bf16 %v242, %v241
    %v300 = vpack.c.bf16 %v244, %v243
    %v301 = vpack.c.bf16 %v246, %v245
    %v302 = vpack.c.bf16 %v248, %v247
    %v303 = vpack.c.bf16 %v250, %v249
    %v304 = vpack.c.bf16 %v252, %v251
    %v305 = vpack.c.bf16 %v254, %v253
    %v306 = vpack.c.bf16 %v256, %v255
    %v307 = vpack.c.bf16 %v258, %v257
    %v308 = vpack.c.bf16 %v260, %v259
    %v309 = vpack.c.bf16 %v262, %v261
    %v310 = vpack.c.bf16 %v264, %v263
    %v311 = vpack.c.bf16 %v266, %v265
    %v312 = vpack.c.bf16 %v268, %v267
    %v313 = vpack.c.bf16 %v270, %v269
    %v314 = vpack.c.bf16 %v272, %v271
    %v315 = vpack.c.bf16 %v274, %v273
    %v316 = vpack.c.bf16 %v276, %v275
    %v317 = vpack.c.bf16 %v278, %v277
    %v318 = vpack.c.bf16 %v280, %v279
    %v319 = vpack.c.bf16 %v282, %v281
    %v320 = vpack.c.bf16 %v284, %v283
    %v321 = vpack.c.bf16 %v286, %v285
    %v322 = vpack.c.bf16 %v288, %v287
    %v323 = vpack.c.bf16 %v290, %v289
    %v324 = vpack.c.bf16 %v292, %v291
    %v325 = vld [vmem:[%s3] sm:$0x3]
    %vm326 = vcmask 31744
    %v328 = vsel %vm326, %v293, 0
    %v331 = vsel %vm326, %v294, 0
    %v334 = vsel %vm326, %v295, 0
    %v337 = vsel %vm326, %v296, 0
    %v340 = vsel %vm326, %v297, 0
    %v343 = vsel %vm326, %v298, 0
    %v346 = vsel %vm326, %v299, 0
    %v349 = vsel %vm326, %v300, 0
    %v352 = vsel %vm326, %v301, 0
    %v355 = vsel %vm326, %v302, 0
    %v358 = vsel %vm326, %v303, 0
    %v361 = vsel %vm326, %v304, 0
    %v364 = vsel %vm326, %v305, 0
    %v367 = vsel %vm326, %v306, 0
    %v370 = vsel %vm326, %v307, 0
    %v373 = vsel %vm326, %v308, 0
    %v376 = vsel %vm326, %v309, 0
    %v379 = vsel %vm326, %v310, 0
    %v382 = vsel %vm326, %v311, 0
    %v385 = vsel %vm326, %v312, 0
    %v388 = vsel %vm326, %v313, 0
    %v391 = vsel %vm326, %v314, 0
    %v394 = vsel %vm326, %v315, 0
    %v397 = vsel %vm326, %v316, 0
    %v400 = vsel %vm326, %v317, 0
    %v403 = vsel %vm326, %v318, 0
    %v406 = vsel %vm326, %v319, 0
    %v409 = vsel %vm326, %v320, 0
    %v412 = vsel %vm326, %v321, 0
    %v415 = vsel %vm326, %v322, 0
    %v418 = vsel %vm326, %v323, 0
    %v421 = vsel %vm326, %v324, 0
    %vm423 = vcmask 1041408
    %v425 = vsel %vm423, %v325, 0
    %427 = vmatprep.subr.bf16.mxu0 0
    %428 = vmatpush1.bf16.msra.mxu0 0
    %429 = vmatprep.subr.bf16.mxu0 0
    %430 = vmatpush1.bf16.msra.mxu0 0
    %431 = vmatprep.subr.bf16.mxu0 0
    %432 = vmatpush1.bf16.msra.mxu0 0
    %433 = vmatprep.subr.bf16.mxu0 0
    %434 = vmatpush1.bf16.msra.mxu0 0
    %435 = vmatprep.subr.bf16.mxu0 0
    %436 = vmatpush1.bf16.msra.mxu0 0
    %437 = vmatprep.subr.bf16.mxu0 0
    %438 = vmatpush1.bf16.msra.mxu0 0
    %439 = vmatprep.subr.bf16.mxu0 0
    %440 = vmatpush1.bf16.msra.mxu0 0
    %441 = vmatprep.subr.bf16.mxu0 0
    %442 = vmatpush1.bf16.msra.mxu0 %v425
    %443 = vmatprep.subr.bf16.mxu0 0
    %444 = vmatpush2.bf16.msra.mxu0 0
    %445 = vmatprep.subr.bf16.mxu0 0
    %446 = vmatpush2.bf16.msra.mxu0 0
    %447 = vmatprep.subr.bf16.mxu0 0
    %448 = vmatpush2.bf16.msra.mxu0 0
    %449 = vmatprep.subr.bf16.mxu0 0
    %450 = vmatpush2.bf16.msra.mxu0 0
    %451 = vmatprep.subr.bf16.mxu0 0
    %452 = vmatpush2.bf16.msra.mxu0 0
    %453 = vmatprep.subr.bf16.mxu0 0
    %454 = vmatpush2.bf16.msra.mxu0 0
    %455 = vmatprep.subr.bf16.mxu0 0
    %456 = vmatpush2.bf16.msra.mxu0 0
    %457 = vmatprep.subr.bf16.mxu0 0
    %458 = vmatpush2.bf16.msra.mxu0 0
    %459 = vmatprep.mubr.bf16.mxu0 0
    %460 = vmatmul.mubr.bf16.gmra.mxu0 %v328
    %v461 = vpop.f32.mrf.mxu0
    %v462 = vadd.f32 0.0, %v461
    %v463 = vpop.f32.mrf.mxu0
    %v464 = vpop.f32.mrf.mxu0
    %v465 = vadd.f32 0.0, %v464
    %v466 = vpop.f32.mrf.mxu0
    %467 = vmatprep.mubr.bf16.mxu0 0
    %468 = vmatmul.mubr.bf16.gmra.mxu0 %v331
    %v469 = vpop.f32.mrf.mxu0
    %v470 = vadd.f32 0.0, %v469
    %v471 = vpop.f32.mrf.mxu0
    %v472 = vpop.f32.mrf.mxu0
    %v473 = vadd.f32 0.0, %v472
    %v474 = vpop.f32.mrf.mxu0
    %475 = vmatprep.mubr.bf16.mxu0 0
    %476 = vmatmul.mubr.bf16.gmra.mxu0 %v334
    %v477 = vpop.f32.mrf.mxu0
    %v478 = vadd.f32 0.0, %v477
    %v479 = vpop.f32.mrf.mxu0
    %v480 = vpop.f32.mrf.mxu0
    %v481 = vadd.f32 0.0, %v480
    %v482 = vpop.f32.mrf.mxu0
    %483 = vmatprep.mubr.bf16.mxu0 0
    %484 = vmatmul.mubr.bf16.gmra.mxu0 %v337
    %v485 = vpop.f32.mrf.mxu0
    %v486 = vadd.f32 0.0, %v485
    %v487 = vpop.f32.mrf.mxu0
    %v488 = vpop.f32.mrf.mxu0
    %v489 = vadd.f32 0.0, %v488
    %v490 = vpop.f32.mrf.mxu0
    %491 = vmatprep.mubr.bf16.mxu0 0
    %492 = vmatmul.mubr.bf16.gmra.mxu0 %v340
    %v493 = vpop.f32.mrf.mxu0
    %v494 = vadd.f32 0.0, %v493
    %v495 = vpop.f32.mrf.mxu0
    %v496 = vpop.f32.mrf.mxu0
    %v497 = vadd.f32 0.0, %v496
    %v498 = vpop.f32.mrf.mxu0
    %499 = vmatprep.mubr.bf16.mxu0 0
    %500 = vmatmul.mubr.bf16.gmra.mxu0 %v343
    %v501 = vpop.f32.mrf.mxu0
    %v502 = vadd.f32 0.0, %v501
    %v503 = vpop.f32.mrf.mxu0
    %v504 = vpop.f32.mrf.mxu0
    %v505 = vadd.f32 0.0, %v504
    %v506 = vpop.f32.mrf.mxu0
    %507 = vmatprep.mubr.bf16.mxu0 0
    %508 = vmatmul.mubr.bf16.gmra.mxu0 %v346
    %v509 = vpop.f32.mrf.mxu0
    %v510 = vadd.f32 0.0, %v509
    %v511 = vpop.f32.mrf.mxu0
    %v512 = vpop.f32.mrf.mxu0
    %v513 = vadd.f32 0.0, %v512
    %v514 = vpop.f32.mrf.mxu0
    %515 = vmatprep.mubr.bf16.mxu0 0
    %516 = vmatmul.mubr.bf16.gmra.mxu0 %v349
    %v517 = vpop.f32.mrf.mxu0
    %v518 = vadd.f32 0.0, %v517
    %v519 = vpop.f32.mrf.mxu0
    %v520 = vpop.f32.mrf.mxu0
    %v521 = vadd.f32 0.0, %v520
    %v522 = vpop.f32.mrf.mxu0
    %523 = vmatprep.mubr.bf16.mxu0 0
    %524 = vmatmul.mubr.bf16.gmra.mxu0 %v352
    %v525 = vpop.f32.mrf.mxu0
    %v526 = vadd.f32 0.0, %v525
    %v527 = vpop.f32.mrf.mxu0
    %v528 = vpop.f32.mrf.mxu0
    %v529 = vadd.f32 0.0, %v528
    %v530 = vpop.f32.mrf.mxu0
    %531 = vmatprep.mubr.bf16.mxu0 0
    %532 = vmatmul.mubr.bf16.gmra.mxu0 %v355
    %v533 = vpop.f32.mrf.mxu0
    %v534 = vadd.f32 0.0, %v533
    %v535 = vpop.f32.mrf.mxu0
    %v536 = vpop.f32.mrf.mxu0
    %v537 = vadd.f32 0.0, %v536
    %v538 = vpop.f32.mrf.mxu0
    %539 = vmatprep.mubr.bf16.mxu0 0
    %540 = vmatmul.mubr.bf16.gmra.mxu0 %v358
    %v541 = vpop.f32.mrf.mxu0
    %v542 = vadd.f32 0.0, %v541
    %v543 = vpop.f32.mrf.mxu0
    %v544 = vpop.f32.mrf.mxu0
    %v545 = vadd.f32 0.0, %v544
    %v546 = vpop.f32.mrf.mxu0
    %547 = vmatprep.mubr.bf16.mxu0 0
    %548 = vmatmul.mubr.bf16.gmra.mxu0 %v361
    %v549 = vpop.f32.mrf.mxu0
    %v550 = vadd.f32 0.0, %v549
    %v551 = vpop.f32.mrf.mxu0
    %v552 = vpop.f32.mrf.mxu0
    %v553 = vadd.f32 0.0, %v552
    %v554 = vpop.f32.mrf.mxu0
    %555 = vmatprep.mubr.bf16.mxu0 0
    %556 = vmatmul.mubr.bf16.gmra.mxu0 %v364
    %v557 = vpop.f32.mrf.mxu0
    %v558 = vadd.f32 0.0, %v557
    %v559 = vpop.f32.mrf.mxu0
    %v560 = vpop.f32.mrf.mxu0
    %v561 = vadd.f32 0.0, %v560
    %v562 = vpop.f32.mrf.mxu0
    %563 = vmatprep.mubr.bf16.mxu0 0
    %564 = vmatmul.mubr.bf16.gmra.mxu0 %v367
    %v565 = vpop.f32.mrf.mxu0
    %v566 = vadd.f32 0.0, %v565
    %v567 = vpop.f32.mrf.mxu0
    %v568 = vpop.f32.mrf.mxu0
    %v569 = vadd.f32 0.0, %v568
    %v570 = vpop.f32.mrf.mxu0
    %571 = vmatprep.mubr.bf16.mxu0 0
    %572 = vmatmul.mubr.bf16.gmra.mxu0 %v370
    %v573 = vpop.f32.mrf.mxu0
    %v574 = vadd.f32 0.0, %v573
    %v575 = vpop.f32.mrf.mxu0
    %v576 = vpop.f32.mrf.mxu0
    %v577 = vadd.f32 0.0, %v576
    %v578 = vpop.f32.mrf.mxu0
    %579 = vmatprep.mubr.bf16.mxu0 0
    %580 = vmatmul.mubr.bf16.gmra.mxu0 %v373
    %v581 = vpop.f32.mrf.mxu0
    %v582 = vadd.f32 0.0, %v581
    %v583 = vpop.f32.mrf.mxu0
    %v584 = vpop.f32.mrf.mxu0
    %v585 = vadd.f32 0.0, %v584
    %v586 = vpop.f32.mrf.mxu0
    %587 = vmatprep.mubr.bf16.mxu0 0
    %588 = vmatmul.mubr.bf16.gmra.mxu0 %v376
    %v589 = vpop.f32.mrf.mxu0
    %v590 = vadd.f32 0.0, %v589
    %v591 = vpop.f32.mrf.mxu0
    %v592 = vpop.f32.mrf.mxu0
    %v593 = vadd.f32 0.0, %v592
    %v594 = vpop.f32.mrf.mxu0
    %595 = vmatprep.mubr.bf16.mxu0 0
    %596 = vmatmul.mubr.bf16.gmra.mxu0 %v379
    %v597 = vpop.f32.mrf.mxu0
    %v598 = vadd.f32 0.0, %v597
    %v599 = vpop.f32.mrf.mxu0
    %v600 = vpop.f32.mrf.mxu0
    %v601 = vadd.f32 0.0, %v600
    %v602 = vpop.f32.mrf.mxu0
    %603 = vmatprep.mubr.bf16.mxu0 0
    %604 = vmatmul.mubr.bf16.gmra.mxu0 %v382
    %v605 = vpop.f32.mrf.mxu0
    %v606 = vadd.f32 0.0, %v605
    %v607 = vpop.f32.mrf.mxu0
    %v608 = vpop.f32.mrf.mxu0
    %v609 = vadd.f32 0.0, %v608
    %v610 = vpop.f32.mrf.mxu0
    %611 = vmatprep.mubr.bf16.mxu0 0
    %612 = vmatmul.mubr.bf16.gmra.mxu0 %v385
    %v613 = vpop.f32.mrf.mxu0
    %v614 = vadd.f32 0.0, %v613
    %v615 = vpop.f32.mrf.mxu0
    %v616 = vpop.f32.mrf.mxu0
    %v617 = vadd.f32 0.0, %v616
    %v618 = vpop.f32.mrf.mxu0
    %619 = vmatprep.mubr.bf16.mxu0 0
    %620 = vmatmul.mubr.bf16.gmra.mxu0 %v388
    %v621 = vpop.f32.mrf.mxu0
    %v622 = vadd.f32 0.0, %v621
    %v623 = vpop.f32.mrf.mxu0
    %v624 = vpop.f32.mrf.mxu0
    %v625 = vadd.f32 0.0, %v624
    %v626 = vpop.f32.mrf.mxu0
    %627 = vmatprep.mubr.bf16.mxu0 0
    %628 = vmatmul.mubr.bf16.gmra.mxu0 %v391
    %v629 = vpop.f32.mrf.mxu0
    %v630 = vadd.f32 0.0, %v629
    %v631 = vpop.f32.mrf.mxu0
    %v632 = vpop.f32.mrf.mxu0
    %v633 = vadd.f32 0.0, %v632
    %v634 = vpop.f32.mrf.mxu0
    %635 = vmatprep.mubr.bf16.mxu0 0
    %636 = vmatmul.mubr.bf16.gmra.mxu0 %v394
    %v637 = vpop.f32.mrf.mxu0
    %v638 = vadd.f32 0.0, %v637
    %v639 = vpop.f32.mrf.mxu0
    %v640 = vpop.f32.mrf.mxu0
    %v641 = vadd.f32 0.0, %v640
    %v642 = vpop.f32.mrf.mxu0
    %643 = vmatprep.mubr.bf16.mxu0 0
    %644 = vmatmul.mubr.bf16.gmra.mxu0 %v397
    %v645 = vpop.f32.mrf.mxu0
    %v646 = vadd.f32 0.0, %v645
    %v647 = vpop.f32.mrf.mxu0
    %v648 = vpop.f32.mrf.mxu0
    %v649 = vadd.f32 0.0, %v648
    %v650 = vpop.f32.mrf.mxu0
    %651 = vmatprep.mubr.bf16.mxu0 0
    %652 = vmatmul.mubr.bf16.gmra.mxu0 %v400
    %v653 = vpop.f32.mrf.mxu0
    %v654 = vadd.f32 0.0, %v653
    %v655 = vpop.f32.mrf.mxu0
    %v656 = vpop.f32.mrf.mxu0
    %v657 = vadd.f32 0.0, %v656
    %v658 = vpop.f32.mrf.mxu0
    %659 = vmatprep.mubr.bf16.mxu0 0
    %660 = vmatmul.mubr.bf16.gmra.mxu0 %v403
    %v661 = vpop.f32.mrf.mxu0
    %v662 = vadd.f32 0.0, %v661
    %v663 = vpop.f32.mrf.mxu0
    %v664 = vpop.f32.mrf.mxu0
    %v665 = vadd.f32 0.0, %v664
    %v666 = vpop.f32.mrf.mxu0
    %667 = vmatprep.mubr.bf16.mxu0 0
    %668 = vmatmul.mubr.bf16.gmra.mxu0 %v406
    %v669 = vpop.f32.mrf.mxu0
    %v670 = vadd.f32 0.0, %v669
    %v671 = vpop.f32.mrf.mxu0
    %v672 = vpop.f32.mrf.mxu0
    %v673 = vadd.f32 0.0, %v672
    %v674 = vpop.f32.mrf.mxu0
    %675 = vmatprep.mubr.bf16.mxu0 0
    %676 = vmatmul.mubr.bf16.gmra.mxu0 %v409
    %v677 = vpop.f32.mrf.mxu0
    %v678 = vadd.f32 0.0, %v677
    %v679 = vpop.f32.mrf.mxu0
    %v680 = vpop.f32.mrf.mxu0
    %v681 = vadd.f32 0.0, %v680
    %v682 = vpop.f32.mrf.mxu0
    %683 = vmatprep.mubr.bf16.mxu0 0
    %684 = vmatmul.mubr.bf16.gmra.mxu0 %v412
    %v685 = vpop.f32.mrf.mxu0
    %v686 = vadd.f32 0.0, %v685
    %v687 = vpop.f32.mrf.mxu0
    %v688 = vpop.f32.mrf.mxu0
    %v689 = vadd.f32 0.0, %v688
    %v690 = vpop.f32.mrf.mxu0
    %691 = vmatprep.mubr.bf16.mxu0 0
    %692 = vmatmul.mubr.bf16.gmra.mxu0 %v415
    %v693 = vpop.f32.mrf.mxu0
    %v694 = vadd.f32 0.0, %v693
    %v695 = vpop.f32.mrf.mxu0
    %v696 = vpop.f32.mrf.mxu0
    %v697 = vadd.f32 0.0, %v696
    %v698 = vpop.f32.mrf.mxu0
    %699 = vmatprep.mubr.bf16.mxu0 0
    %700 = vmatmul.mubr.bf16.gmra.mxu0 %v418
    %v701 = vpop.f32.mrf.mxu0
    %v702 = vadd.f32 0.0, %v701
    %v703 = vpop.f32.mrf.mxu0
    %v704 = vpop.f32.mrf.mxu0
    %v705 = vadd.f32 0.0, %v704
    %v706 = vpop.f32.mrf.mxu0
    %707 = vmatprep.mubr.bf16.mxu0 0
    %708 = vmatmul.mubr.bf16.gmra.mxu0 %v421
    %v709 = vpop.f32.mrf.mxu0
    %v710 = vadd.f32 0.0, %v709
    %v711 = vpop.f32.mrf.mxu0
    %v712 = vpop.f32.mrf.mxu0
    %v713 = vadd.f32 0.0, %v712
    %v714 = vpop.f32.mrf.mxu0
    %715 = vdwg.mxu0
    %716 = vst.msk [vmem:[%s4] sm:$0xff] %vm326, %v462
    %717 = vst.msk [vmem:[%s4 + $0x8] sm:$0xff] %vm326, %v465
    %718 = vst.msk [vmem:[%s4 + $0x10] sm:$0xff] %vm326, %v470
    %719 = vst.msk [vmem:[%s4 + $0x18] sm:$0xff] %vm326, %v473
    %720 = vst.msk [vmem:[%s4 + $0x20] sm:$0xff] %vm326, %v478
    %721 = vst.msk [vmem:[%s4 + $0x28] sm:$0xff] %vm326, %v481
    %722 = vst.msk [vmem:[%s4 + $0x30] sm:$0xff] %vm326, %v486
    %723 = vst.msk [vmem:[%s4 + $0x38] sm:$0xff] %vm326, %v489
    %724 = vst.msk [vmem:[%s4 + $0x40] sm:$0xff] %vm326, %v494
    %725 = vst.msk [vmem:[%s4 + $0x48] sm:$0xff] %vm326, %v497
    %726 = vst.msk [vmem:[%s4 + $0x50] sm:$0xff] %vm326, %v502
    %727 = vst.msk [vmem:[%s4 + $0x58] sm:$0xff] %vm326, %v505
    %728 = vst.msk [vmem:[%s4 + $0x60] sm:$0xff] %vm326, %v510
    %729 = vst.msk [vmem:[%s4 + $0x68] sm:$0xff] %vm326, %v513
    %730 = vst.msk [vmem:[%s4 + $0x70] sm:$0xff] %vm326, %v518
    %731 = vst.msk [vmem:[%s4 + $0x78] sm:$0xff] %vm326, %v521
    %732 = vst.msk [vmem:[%s4 + $0x80] sm:$0xff] %vm326, %v526
    %733 = vst.msk [vmem:[%s4 + $0x88] sm:$0xff] %vm326, %v529
    %734 = vst.msk [vmem:[%s4 + $0x90] sm:$0xff] %vm326, %v534
    %735 = vst.msk [vmem:[%s4 + $0x98] sm:$0xff] %vm326, %v537
    %736 = vst.msk [vmem:[%s4 + $0xa0] sm:$0xff] %vm326, %v542
    %737 = vst.msk [vmem:[%s4 + $0xa8] sm:$0xff] %vm326, %v545
    %738 = vst.msk [vmem:[%s4 + $0xb0] sm:$0xff] %vm326, %v550
    %739 = vst.msk [vmem:[%s4 + $0xb8] sm:$0xff] %vm326, %v553
    %740 = vst.msk [vmem:[%s4 + $0xc0] sm:$0xff] %vm326, %v558
    %741 = vst.msk [vmem:[%s4 + $0xc8] sm:$0xff] %vm326, %v561
    %742 = vst.msk [vmem:[%s4 + $0xd0] sm:$0xff] %vm326, %v566
    %743 = vst.msk [vmem:[%s4 + $0xd8] sm:$0xff] %vm326, %v569
    %744 = vst.msk [vmem:[%s4 + $0xe0] sm:$0xff] %vm326, %v574
    %745 = vst.msk [vmem:[%s4 + $0xe8] sm:$0xff] %vm326, %v577
    %746 = vst.msk [vmem:[%s4 + $0xf0] sm:$0xff] %vm326, %v582
    %747 = vst.msk [vmem:[%s4 + $0xf8] sm:$0xff] %vm326, %v585
    %748 = vst.msk [vmem:[%s4 + $0x100] sm:$0xff] %vm326, %v590
    %749 = vst.msk [vmem:[%s4 + $0x108] sm:$0xff] %vm326, %v593
    %750 = vst.msk [vmem:[%s4 + $0x110] sm:$0xff] %vm326, %v598
    %751 = vst.msk [vmem:[%s4 + $0x118] sm:$0xff] %vm326, %v601
    %752 = vst.msk [vmem:[%s4 + $0x120] sm:$0xff] %vm326, %v606
    %753 = vst.msk [vmem:[%s4 + $0x128] sm:$0xff] %vm326, %v609
    %754 = vst.msk [vmem:[%s4 + $0x130] sm:$0xff] %vm326, %v614
    %755 = vst.msk [vmem:[%s4 + $0x138] sm:$0xff] %vm326, %v617
    %756 = vst.msk [vmem:[%s4 + $0x140] sm:$0xff] %vm326, %v622
    %757 = vst.msk [vmem:[%s4 + $0x148] sm:$0xff] %vm326, %v625
    %758 = vst.msk [vmem:[%s4 + $0x150] sm:$0xff] %vm326, %v630
    %759 = vst.msk [vmem:[%s4 + $0x158] sm:$0xff] %vm326, %v633
    %760 = vst.msk [vmem:[%s4 + $0x160] sm:$0xff] %vm326, %v638
    %761 = vst.msk [vmem:[%s4 + $0x168] sm:$0xff] %vm326, %v641
    %762 = vst.msk [vmem:[%s4 + $0x170] sm:$0xff] %vm326, %v646
    %763 = vst.msk [vmem:[%s4 + $0x178] sm:$0xff] %vm326, %v649
    %764 = vst.msk [vmem:[%s4 + $0x180] sm:$0xff] %vm326, %v654
    %765 = vst.msk [vmem:[%s4 + $0x188] sm:$0xff] %vm326, %v657
    %766 = vst.msk [vmem:[%s4 + $0x190] sm:$0xff] %vm326, %v662
    %767 = vst.msk [vmem:[%s4 + $0x198] sm:$0xff] %vm326, %v665
    %768 = vst.msk [vmem:[%s4 + $0x1a0] sm:$0xff] %vm326, %v670
    %769 = vst.msk [vmem:[%s4 + $0x1a8] sm:$0xff] %vm326, %v673
    %770 = vst.msk [vmem:[%s4 + $0x1b0] sm:$0xff] %vm326, %v678
    %771 = vst.msk [vmem:[%s4 + $0x1b8] sm:$0xff] %vm326, %v681
    %772 = vst.msk [vmem:[%s4 + $0x1c0] sm:$0xff] %vm326, %v686
    %773 = vst.msk [vmem:[%s4 + $0x1c8] sm:$0xff] %vm326, %v689
    %774 = vst.msk [vmem:[%s4 + $0x1d0] sm:$0xff] %vm326, %v694
    %775 = vst.msk [vmem:[%s4 + $0x1d8] sm:$0xff] %vm326, %v697
    %776 = vst.msk [vmem:[%s4 + $0x1e0] sm:$0xff] %vm326, %v702
    %777 = vst.msk [vmem:[%s4 + $0x1e8] sm:$0xff] %vm326, %v705
    %778 = vst.msk [vmem:[%s4 + $0x1f0] sm:$0xff] %vm326, %v710
    %779 = vst.msk [vmem:[%s4 + $0x1f8] sm:$0xff] %vm326, %v713
    %v780 = vsel %vm326, %v462, 0.0
    %v781 = vsel %vm326, %v465, 0.0
    %v782 = vadd.f32 %v780, %v781
    %v783 = vsel %vm326, %v470, 0.0
    %v784 = vadd.f32 %v782, %v783
    %v785 = vsel %vm326, %v473, 0.0
    %v786 = vadd.f32 %v784, %v785
    %v787 = vsel %vm326, %v478, 0.0
    %v788 = vadd.f32 %v786, %v787
    %v789 = vsel %vm326, %v481, 0.0
    %v790 = vadd.f32 %v788, %v789
    %v791 = vsel %vm326, %v486, 0.0
    %v792 = vadd.f32 %v790, %v791
    %v793 = vsel %vm326, %v489, 0.0
    %v794 = vadd.f32 %v792, %v793
    %v795 = vsel %vm326, %v494, 0.0
    %v796 = vadd.f32 %v794, %v795
    %v797 = vsel %vm326, %v497, 0.0
    %v798 = vadd.f32 %v796, %v797
    %v799 = vsel %vm326, %v502, 0.0
    %v800 = vadd.f32 %v798, %v799
    %v801 = vsel %vm326, %v505, 0.0
    %v802 = vadd.f32 %v800, %v801
    %v803 = vsel %vm326, %v510, 0.0
    %v804 = vadd.f32 %v802, %v803
    %v805 = vsel %vm326, %v513, 0.0
    %v806 = vadd.f32 %v804, %v805
    %v807 = vsel %vm326, %v518, 0.0
    %v808 = vadd.f32 %v806, %v807
    %v809 = vsel %vm326, %v521, 0.0
    %v810 = vadd.f32 %v808, %v809
    %v811 = vsel %vm326, %v526, 0.0
    %v812 = vadd.f32 %v810, %v811
    %v813 = vsel %vm326, %v529, 0.0
    %v814 = vadd.f32 %v812, %v813
    %v815 = vsel %vm326, %v534, 0.0
    %v816 = vadd.f32 %v814, %v815
    %v817 = vsel %vm326, %v537, 0.0
    %v818 = vadd.f32 %v816, %v817
    %v819 = vsel %vm326, %v542, 0.0
    %v820 = vadd.f32 %v818, %v819
    %v821 = vsel %vm326, %v545, 0.0
    %v822 = vadd.f32 %v820, %v821
    %v823 = vsel %vm326, %v550, 0.0
    %v824 = vadd.f32 %v822, %v823
    %v825 = vsel %vm326, %v553, 0.0
    %v826 = vadd.f32 %v824, %v825
    %v827 = vsel %vm326, %v558, 0.0
    %v828 = vadd.f32 %v826, %v827
    %v829 = vsel %vm326, %v561, 0.0
    %v830 = vadd.f32 %v828, %v829
    %v831 = vsel %vm326, %v566, 0.0
    %v832 = vadd.f32 %v830, %v831
    %v833 = vsel %vm326, %v569, 0.0
    %v834 = vadd.f32 %v832, %v833
    %v835 = vsel %vm326, %v574, 0.0
    %v836 = vadd.f32 %v834, %v835
    %v837 = vsel %vm326, %v577, 0.0
    %v838 = vadd.f32 %v836, %v837
    %v839 = vsel %vm326, %v582, 0.0
    %v840 = vadd.f32 %v838, %v839
    %v841 = vsel %vm326, %v585, 0.0
    %v842 = vadd.f32 %v840, %v841
    %v843 = vsel %vm326, %v590, 0.0
    %v844 = vadd.f32 %v842, %v843
    %v845 = vsel %vm326, %v593, 0.0
    %v846 = vadd.f32 %v844, %v845
    %v847 = vsel %vm326, %v598, 0.0
    %v848 = vadd.f32 %v846, %v847
    %v849 = vsel %vm326, %v601, 0.0
    %v850 = vadd.f32 %v848, %v849
    %v851 = vsel %vm326, %v606, 0.0
    %v852 = vadd.f32 %v850, %v851
    %v853 = vsel %vm326, %v609, 0.0
    %v854 = vadd.f32 %v852, %v853
    %v855 = vsel %vm326, %v614, 0.0
    %v856 = vadd.f32 %v854, %v855
    %v857 = vsel %vm326, %v617, 0.0
    %v858 = vadd.f32 %v856, %v857
    %v859 = vsel %vm326, %v622, 0.0
    %v860 = vadd.f32 %v858, %v859
    %v861 = vsel %vm326, %v625, 0.0
    %v862 = vadd.f32 %v860, %v861
    %v863 = vsel %vm326, %v630, 0.0
    %v864 = vadd.f32 %v862, %v863
    %v865 = vsel %vm326, %v633, 0.0
    %v866 = vadd.f32 %v864, %v865
    %v867 = vsel %vm326, %v638, 0.0
    %v868 = vadd.f32 %v866, %v867
    %v869 = vsel %vm326, %v641, 0.0
    %v870 = vadd.f32 %v868, %v869
    %v871 = vsel %vm326, %v646, 0.0
    %v872 = vadd.f32 %v870, %v871
    %v873 = vsel %vm326, %v649, 0.0
    %v874 = vadd.f32 %v872, %v873
    %v875 = vsel %vm326, %v654, 0.0
    %v876 = vadd.f32 %v874, %v875
    %v877 = vsel %vm326, %v657, 0.0
    %v878 = vadd.f32 %v876, %v877
    %v879 = vsel %vm326, %v662, 0.0
    %v880 = vadd.f32 %v878, %v879
    %v881 = vsel %vm326, %v665, 0.0
    %v882 = vadd.f32 %v880, %v881
    %v883 = vsel %vm326, %v670, 0.0
    %v884 = vadd.f32 %v882, %v883
    %v885 = vsel %vm326, %v673, 0.0
    %v886 = vadd.f32 %v884, %v885
    %v887 = vsel %vm326, %v678, 0.0
    %v888 = vadd.f32 %v886, %v887
    %v889 = vsel %vm326, %v681, 0.0
    %v890 = vadd.f32 %v888, %v889
    %v891 = vsel %vm326, %v686, 0.0
    %v892 = vadd.f32 %v890, %v891
    %v893 = vsel %vm326, %v689, 0.0
    %v894 = vadd.f32 %v892, %v893
    %v895 = vsel %vm326, %v694, 0.0
    %v896 = vadd.f32 %v894, %v895
    %v897 = vsel %vm326, %v697, 0.0
    %v898 = vadd.f32 %v896, %v897
    %v899 = vsel %vm326, %v702, 0.0
    %v900 = vadd.f32 %v898, %v899
    %v901 = vsel %vm326, %v705, 0.0
    %v902 = vadd.f32 %v900, %v901
    %v903 = vsel %vm326, %v710, 0.0
    %v904 = vadd.f32 %v902, %v903
    %v905 = vsel %vm326, %v713, 0.0
    %v906 = vadd.f32 %v904, %v905
    %v907 = vrot.slane %v906, 4
    %v908 = vadd.f32 %v906, %v907
    %v909 = vrot.slane %v908, 2
    %v910 = vadd.f32 %v908, %v909
    %v911 = vrot.slane %v910, 1
    %v912 = vadd.f32 %v910, %v911
    %vm913 = vcmask 24576
    %914 = vst.msk [vmem:[#allocation2] sm:$0x1] %vm913, %v912
    %v915 = vmul.f32 %v462, %v462
    %v916 = vmul.f32 %v465, %v465
    %v917 = vmul.f32 %v470, %v470
    %v918 = vmul.f32 %v473, %v473
    %v919 = vmul.f32 %v478, %v478
    %v920 = vmul.f32 %v481, %v481
    %v921 = vmul.f32 %v486, %v486
    %v922 = vmul.f32 %v489, %v489
    %v923 = vmul.f32 %v494, %v494
    %v924 = vmul.f32 %v497, %v497
    %v925 = vmul.f32 %v502, %v502
    %v926 = vmul.f32 %v505, %v505
    %v927 = vmul.f32 %v510, %v510
    %v928 = vmul.f32 %v513, %v513
    %v929 = vmul.f32 %v518, %v518
    %v930 = vmul.f32 %v521, %v521
    %v931 = vmul.f32 %v526, %v526
    %v932 = vmul.f32 %v529, %v529
    %v933 = vmul.f32 %v534, %v534
    %v934 = vmul.f32 %v537, %v537
    %v935 = vmul.f32 %v542, %v542
    %v936 = vmul.f32 %v545, %v545
    %v937 = vmul.f32 %v550, %v550
    %v938 = vmul.f32 %v553, %v553
    %v939 = vmul.f32 %v558, %v558
    %v940 = vmul.f32 %v561, %v561
    %v941 = vmul.f32 %v566, %v566
    %v942 = vmul.f32 %v569, %v569
    %v943 = vmul.f32 %v574, %v574
    %v944 = vmul.f32 %v577, %v577
    %v945 = vmul.f32 %v582, %v582
    %v946 = vmul.f32 %v585, %v585
    %v947 = vmul.f32 %v590, %v590
    %v948 = vmul.f32 %v593, %v593
    %v949 = vmul.f32 %v598, %v598
    %v950 = vmul.f32 %v601, %v601
    %v951 = vmul.f32 %v606, %v606
    %v952 = vmul.f32 %v609, %v609
    %v953 = vmul.f32 %v614, %v614
    %v954 = vmul.f32 %v617, %v617
    %v955 = vmul.f32 %v622, %v622
    %v956 = vmul.f32 %v625, %v625
    %v957 = vmul.f32 %v630, %v630
    %v958 = vmul.f32 %v633, %v633
    %v959 = vmul.f32 %v638, %v638
    %v960 = vmul.f32 %v641, %v641
    %v961 = vmul.f32 %v646, %v646
    %v962 = vmul.f32 %v649, %v649
    %v963 = vmul.f32 %v654, %v654
    %v964 = vmul.f32 %v657, %v657
    %v965 = vmul.f32 %v662, %v662
    %v966 = vmul.f32 %v665, %v665
    %v967 = vmul.f32 %v670, %v670
    %v968 = vmul.f32 %v673, %v673
    %v969 = vmul.f32 %v678, %v678
    %v970 = vmul.f32 %v681, %v681
    %v971 = vmul.f32 %v686, %v686
    %v972 = vmul.f32 %v689, %v689
    %v973 = vmul.f32 %v694, %v694
    %v974 = vmul.f32 %v697, %v697
    %v975 = vmul.f32 %v702, %v702
    %v976 = vmul.f32 %v705, %v705
    %v977 = vmul.f32 %v710, %v710
    %v978 = vmul.f32 %v713, %v713
    %v979 = vsel %vm326, %v915, 0.0
    %v980 = vsel %vm326, %v916, 0.0
    %v981 = vadd.f32 %v979, %v980
    %v982 = vsel %vm326, %v917, 0.0
    %v983 = vadd.f32 %v981, %v982
    %v984 = vsel %vm326, %v918, 0.0
    %v985 = vadd.f32 %v983, %v984
    %v986 = vsel %vm326, %v919, 0.0
    %v987 = vadd.f32 %v985, %v986
    %v988 = vsel %vm326, %v920, 0.0
    %v989 = vadd.f32 %v987, %v988
    %v990 = vsel %vm326, %v921, 0.0
    %v991 = vadd.f32 %v989, %v990
    %v992 = vsel %vm326, %v922, 0.0
    %v993 = vadd.f32 %v991, %v992
    %v994 = vsel %vm326, %v923, 0.0
    %v995 = vadd.f32 %v993, %v994
    %v996 = vsel %vm326, %v924, 0.0
    %v997 = vadd.f32 %v995, %v996
    %v998 = vsel %vm326, %v925, 0.0
    %v999 = vadd.f32 %v997, %v998
    %v1000 = vsel %vm326, %v926, 0.0
    %v1001 = vadd.f32 %v999, %v1000
    %v1002 = vsel %vm326, %v927, 0.0
    %v1003 = vadd.f32 %v1001, %v1002
    %v1004 = vsel %vm326, %v928, 0.0
    %v1005 = vadd.f32 %v1003, %v1004
    %v1006 = vsel %vm326, %v929, 0.0
    %v1007 = vadd.f32 %v1005, %v1006
    %v1008 = vsel %vm326, %v930, 0.0
    %v1009 = vadd.f32 %v1007, %v1008
    %v1010 = vsel %vm326, %v931, 0.0
    %v1011 = vadd.f32 %v1009, %v1010
    %v1012 = vsel %vm326, %v932, 0.0
    %v1013 = vadd.f32 %v1011, %v1012
    %v1014 = vsel %vm326, %v933, 0.0
    %v1015 = vadd.f32 %v1013, %v1014
    %v1016 = vsel %vm326, %v934, 0.0
    %v1017 = vadd.f32 %v1015, %v1016
    %v1018 = vsel %vm326, %v935, 0.0
    %v1019 = vadd.f32 %v1017, %v1018
    %v1020 = vsel %vm326, %v936, 0.0
    %v1021 = vadd.f32 %v1019, %v1020
    %v1022 = vsel %vm326, %v937, 0.0
    %v1023 = vadd.f32 %v1021, %v1022
    %v1024 = vsel %vm326, %v938, 0.0
    %v1025 = vadd.f32 %v1023, %v1024
    %v1026 = vsel %vm326, %v939, 0.0
    %v1027 = vadd.f32 %v1025, %v1026
    %v1028 = vsel %vm326, %v940, 0.0
    %v1029 = vadd.f32 %v1027, %v1028
    %v1030 = vsel %vm326, %v941, 0.0
    %v1031 = vadd.f32 %v1029, %v1030
    %v1032 = vsel %vm326, %v942, 0.0
    %v1033 = vadd.f32 %v1031, %v1032
    %v1034 = vsel %vm326, %v943, 0.0
    %v1035 = vadd.f32 %v1033, %v1034
    %v1036 = vsel %vm326, %v944, 0.0
    %v1037 = vadd.f32 %v1035, %v1036
    %v1038 = vsel %vm326, %v945, 0.0
    %v1039 = vadd.f32 %v1037, %v1038
    %v1040 = vsel %vm326, %v946, 0.0
    %v1041 = vadd.f32 %v1039, %v1040
    %v1042 = vsel %vm326, %v947, 0.0
    %v1043 = vadd.f32 %v1041, %v1042
    %v1044 = vsel %vm326, %v948, 0.0
    %v1045 = vadd.f32 %v1043, %v1044
    %v1046 = vsel %vm326, %v949, 0.0
    %v1047 = vadd.f32 %v1045, %v1046
    %v1048 = vsel %vm326, %v950, 0.0
    %v1049 = vadd.f32 %v1047, %v1048
    %v1050 = vsel %vm326, %v951, 0.0
    %v1051 = vadd.f32 %v1049, %v1050
    %v1052 = vsel %vm326, %v952, 0.0
    %v1053 = vadd.f32 %v1051, %v1052
    %v1054 = vsel %vm326, %v953, 0.0
    %v1055 = vadd.f32 %v1053, %v1054
    %v1056 = vsel %vm326, %v954, 0.0
    %v1057 = vadd.f32 %v1055, %v1056
    %v1058 = vsel %vm326, %v955, 0.0
    %v1059 = vadd.f32 %v1057, %v1058
    %v1060 = vsel %vm326, %v956, 0.0
    %v1061 = vadd.f32 %v1059, %v1060
    %v1062 = vsel %vm326, %v957, 0.0
    %v1063 = vadd.f32 %v1061, %v1062
    %v1064 = vsel %vm326, %v958, 0.0
    %v1065 = vadd.f32 %v1063, %v1064
    %v1066 = vsel %vm326, %v959, 0.0
    %v1067 = vadd.f32 %v1065, %v1066
    %v1068 = vsel %vm326, %v960, 0.0
    %v1069 = vadd.f32 %v1067, %v1068
    %v1070 = vsel %vm326, %v961, 0.0
    %v1071 = vadd.f32 %v1069, %v1070
    %v1072 = vsel %vm326, %v962, 0.0
    %v1073 = vadd.f32 %v1071, %v1072
    %v1074 = vsel %vm326, %v963, 0.0
    %v1075 = vadd.f32 %v1073, %v1074
    %v1076 = vsel %vm326, %v964, 0.0
    %v1077 = vadd.f32 %v1075, %v1076
    %v1078 = vsel %vm326, %v965, 0.0
    %v1079 = vadd.f32 %v1077, %v1078
    %v1080 = vsel %vm326, %v966, 0.0
    %v1081 = vadd.f32 %v1079, %v1080
    %v1082 = vsel %vm326, %v967, 0.0
    %v1083 = vadd.f32 %v1081, %v1082
    %v1084 = vsel %vm326, %v968, 0.0
    %v1085 = vadd.f32 %v1083, %v1084
    %v1086 = vsel %vm326, %v969, 0.0
    %v1087 = vadd.f32 %v1085, %v1086
    %v1088 = vsel %vm326, %v970, 0.0
    %v1089 = vadd.f32 %v1087, %v1088
    %v1090 = vsel %vm326, %v971, 0.0
    %v1091 = vadd.f32 %v1089, %v1090
    %v1092 = vsel %vm326, %v972, 0.0
    %v1093 = vadd.f32 %v1091, %v1092
    %v1094 = vsel %vm326, %v973, 0.0
    %v1095 = vadd.f32 %v1093, %v1094
    %v1096 = vsel %vm326, %v974, 0.0
    %v1097 = vadd.f32 %v1095, %v1096
    %v1098 = vsel %vm326, %v975, 0.0
    %v1099 = vadd.f32 %v1097, %v1098
    %v1100 = vsel %vm326, %v976, 0.0
    %v1101 = vadd.f32 %v1099, %v1100
    %v1102 = vsel %vm326, %v977, 0.0
    %v1103 = vadd.f32 %v1101, %v1102
    %v1104 = vsel %vm326, %v978, 0.0
    %v1105 = vadd.f32 %v1103, %v1104
    %v1106 = vrot.slane %v1105, 4
    %v1107 = vadd.f32 %v1105, %v1106
    %v1108 = vrot.slane %v1107, 2
    %v1109 = vadd.f32 %v1107, %v1108
    %v1110 = vrot.slane %v1109, 1
    %v1111 = vadd.f32 %v1109, %v1110
    %1112 = vst.msk [vmem:[#allocation4] sm:$0x1] %vm913, %v1111
    // Predicated region
    $region18: #{tpu_custom_call.1} parent=1 // pred_check
      _
    $region19: #{tpu_custom_call.1} parent=1 // pred_check_branch
      %1114 = sbr.rel (0) target = $region21
    $region20: #{tpu_custom_call.1} parent=1 // pred_region
      _
    $region21: #{tpu_custom_call.1} parent=1 // pred_fallthru
      _
    // Predicated region
    $region22: #{tpu_custom_call.1} parent=1 // pred_check
      _
    $region23: #{tpu_custom_call.1} parent=1 // pred_check_branch
      %1116 = sbr.rel (0) target = $region25
    $region24: #{tpu_custom_call.1} parent=1 // pred_region
      %s1118 = ssub.s32 16, 16
      %1119 = vsyncadd [#allocation3], %s1118
      %s1121 = sshll.u32 [#allocation2], 4
      %s1122 = int_to_ptr.vmem [resolvable:$true] %s1121
      %1124 = dma.vmem_to_hbm [thread:$0]  %s1122, 16, %s5, [#allocation3]
    $region25: #{tpu_custom_call.1} parent=1 // pred_fallthru
      _
    // Predicated region
    $region26: #{tpu_custom_call.1} parent=1 // pred_check
      _
    $region27: #{tpu_custom_call.1} parent=1 // pred_check_branch
      %1126 = sbr.rel (0) target = $region29
    $region28: #{tpu_custom_call.1} parent=1 // pred_region
      %s1128 = ssub.s32 16, 16
      %1129 = vsyncadd [#allocation5], %s1128
      %s1131 = sshll.u32 [#allocation4], 4
      %s1132 = int_to_ptr.vmem [resolvable:$true] %s1131
      %1134 = dma.vmem_to_hbm [thread:$0]  %s1132, 16, %s6, [#allocation5]
    $region29: #{tpu_custom_call.1} parent=1 // pred_fallthru
      _
    // Predicated region
    $region30: #{tpu_custom_call.1} parent=1 // pred_check
      _
    $region31: #{tpu_custom_call.1} parent=1 // pred_check_branch
      %1136 = sbr.rel (0) target = $region33
    $region32: #{tpu_custom_call.1} parent=1 // pred_region
      _
    $region33: #{tpu_custom_call.1} parent=1 // pred_fallthru
      _
    // Predicated region
    $region34: #{tpu_custom_call.1} parent=1 // pred_check
      _
    $region35: #{tpu_custom_call.1} parent=1 // pred_check_branch
      %1138 = sbr.rel (0) target = $region37
    $region36: #{tpu_custom_call.1} parent=1 // pred_region
      %1139 = dma.done [#allocation3], 16
    $region37: #{tpu_custom_call.1} parent=1 // pred_fallthru
      _
    // Predicated region
    $region38: #{tpu_custom_call.1} parent=1 // pred_check
      _
    $region39: #{tpu_custom_call.1} parent=1 // pred_check_branch
      %1141 = sbr.rel (0) target = $region41
    $region40: #{tpu_custom_call.1} parent=1 // pred_region
      %1142 = dma.done [#allocation5], 16
    $region41: #{tpu_custom_call.1} parent=1 // pred_fallthru
      _
    %1143 = vsyncpa [#allocation3], 1
    %1144 = vsyncpa [#allocation5], 1

</llo_original>
